<compile_context>
chip_gen: v7x
topology: tpu7x:2x2x1
jax: 0.10.0
libtpu: 0.0.40
codegen_flags: <defaults>
</compile_context>

<pallas_src>
import functools

import jax
import jax.numpy as jnp
from jax.experimental import pallas as pl
from jax.experimental.pallas import tpu as pltpu

_SUBLANE = 8            # f32 sublane granularity for the batch (row) dim
_SINGLE_TILE_ROWS = 256 # below this, one block (tb = B): no grid-loop overhead
_MAX_TB = 2048          # row-tile cap; 2048 x 128 f32 tiles are ~1 MiB, trivially
                        # double-buffered in VMEM on v5e/v6e/v7x


def _round_up(x, m):
    return (x + m - 1) // m * m


def _cdiv(a, b):
    return -(-a // b)


def _choose_batch_tile(batch):
    """Pick (tile_rows, grid_size) for the batch dimension."""
    if batch <= _SINGLE_TILE_ROWS:
        # Single block equal to the full batch dim (allowed by the (8,128) rule).
        return batch, 1
    # >= 2 balanced multiple-of-8 tiles: shards across v7x's 2 TCs and keeps
    # per-step overhead low on single-TC v5e/v6e.  Ragged last block is masked.
    tb = min(_round_up(_cdiv(batch, 2), _SUBLANE), _MAX_TB)
    return tb, _cdiv(batch, tb)


def _lut1d_kernel(x_ref, w_ref, b_ref, o_ref):
    # x: (tb, n_feats) f32, w: (n_feats, out_dim) f32 (pre-transposed (K,N) rhs).
    y = jnp.dot(x_ref[...], w_ref[...], preferred_element_type=jnp.float32)
    y = y + b_ref[...]                                   # bias broadcast over rows
    o_ref[...] = jax.nn.sigmoid(y).astype(o_ref.dtype)   # elementwise on VPU/EUP


def prepare_lut1d_params(weight, bias):
    """One-time parameter prep (call once per model, NOT per forward).

    Args:
      weight: (out_dim, n_feats) float32 -- PyTorch nn.Linear layout
      bias:   (out_dim,) float32
    Returns:
      w_t:   (n_feats, out_dim) float32 -- (K, N) rhs for the MXU
      b_row: (1, out_dim) float32
    """
    weight = jnp.asarray(weight, jnp.float32)
    bias = jnp.asarray(bias, jnp.float32)
    return jnp.transpose(weight), bias.reshape(1, -1)


@functools.partial(jax.jit, static_argnames=("n_colors", "n_vertices", "color_share"))
def lut1d_generator_forward(x, w_t, b_row, *, n_colors, n_vertices, color_share=False):
    """Pallas implementation of LUT1DGenerator.forward.

    Args:
      x:     (B, ...) float32 -- flattened to (B, n_feats) like x.view(B, -1)
      w_t:   (n_feats, out_dim) float32 -- from prepare_lut1d_params
      b_row: (1, out_dim) float32       -- from prepare_lut1d_params
    Returns:
      lut1d: (B, n_colors, n_vertices) float32 in (0, 1)
    """
    B = x.shape[0]
    x2d = x.reshape(B, -1).astype(jnp.float32)   # x.view(x.shape[0], -1)
    n_feats = x2d.shape[1]
    out_dim = w_t.shape[1]

    tb, grid_b = _choose_batch_tile(B)

    cost = pl.CostEstimate(
        flops=2 * B * n_feats * out_dim,
        transcendentals=B * out_dim,                       # sigmoid exp
        bytes_accessed=4 * (B * n_feats + n_feats * out_dim
                            + out_dim + B * out_dim),
    )

    out = pl.pallas_call(
        _lut1d_kernel,
        out_shape=jax.ShapeDtypeStruct((B, out_dim), jnp.float32),
        grid=(grid_b,),
        in_specs=[
            pl.BlockSpec((tb, n_feats), lambda i: (i, 0),
                         memory_space=pltpu.MemorySpace.VMEM),
            pl.BlockSpec((n_feats, out_dim), lambda i: (0, 0),
                         memory_space=pltpu.MemorySpace.VMEM),
            pl.BlockSpec((1, out_dim), lambda i: (0, 0),
                         memory_space=pltpu.MemorySpace.VMEM),
        ],
        out_specs=pl.BlockSpec((tb, out_dim), lambda i: (i, 0),
                               memory_space=pltpu.MemorySpace.VMEM),
        compiler_params=pltpu.CompilerParams(
            dimension_semantics=("parallel",)),            # batch axis -> 2 TCs on v7x
        cost_estimate=cost,
    )(x2d, w_t, b_row)

    lut1d = out.reshape(B, -1, n_vertices)                 # (B, repeat, n_vertices)
    if color_share:
        # repeat_interleave over the channel dim (jnp.repeat with a scalar count
        # matches torch.repeat_interleave exactly).
        lut1d = jnp.repeat(lut1d, n_colors, axis=1)
    return lut1d


def _reference(x, weight, bias, *, n_colors, n_vertices, color_share=False):
    B = x.shape[0]
    x2d = x.reshape(B, -1)
    y = x2d @ weight.T + bias
    lut1d = y.reshape(B, -1, n_vertices)
    if color_share:
        lut1d = jnp.repeat(lut1d, n_colors, axis=1)
    return jax.nn.sigmoid(lut1d)


if __name__ == "__main__":
    # Module hyper-params (small, consistent with the forward).
    n_colors = 3
    n_vertices = 16
    n_feats = 32
    batch = 2

    key = jax.random.PRNGKey(0)
    k_x, k_w, k_b = jax.random.split(key, 3)

    # nn.Linear(n_feats, n_vertices * n_colors)  (color_share=False -> repeat=3)
    out_dim = n_vertices * n_colors
    x = jax.random.normal(k_x, (batch, n_feats), dtype=jnp.float32)
    weight = jax.random.normal(k_w, (out_dim, n_feats), dtype=jnp.float32) * 0.1
    bias = jax.random.normal(k_b, (out_dim,), dtype=jnp.float32) * 0.01
    w_t, b_row = prepare_lut1d_params(weight, bias)        # one-time prep

    lut1d = jax.block_until_ready(
        lut1d_generator_forward(x, w_t, b_row, n_colors=n_colors,
                                n_vertices=n_vertices, color_share=False))
    ref = _reference(x, weight, bias, n_colors=n_colors, n_vertices=n_vertices,
                     color_share=False)
    assert lut1d.shape == (batch, n_colors, n_vertices), lut1d.shape
    assert jnp.allclose(lut1d, ref, atol=1e-5, rtol=1e-5)

    # color_share=True variant (single shared LUT, out_dim = n_vertices).
    out_dim_cs = n_vertices
    w_cs = jax.random.normal(k_w, (out_dim_cs, n_feats), dtype=jnp.float32) * 0.1
    b_cs = jax.random.normal(k_b, (out_dim_cs,), dtype=jnp.float32) * 0.01
    w_cs_t, b_cs_row = prepare_lut1d_params(w_cs, b_cs)
    lut1d_cs = jax.block_until_ready(
        lut1d_generator_forward(x, w_cs_t, b_cs_row, n_colors=n_colors,
                                n_vertices=n_vertices, color_share=True))
    ref_cs = _reference(x, w_cs, b_cs, n_colors=n_colors, n_vertices=n_vertices,
                        color_share=True)
    assert lut1d_cs.shape == (batch, n_colors, n_vertices), lut1d_cs.shape
    assert jnp.allclose(lut1d_cs, ref_cs, atol=1e-5, rtol=1e-5)

    # Larger, non-multiple-of-tile batch exercising the gridded path:
    # B=601 -> tb=304, grid=(2,), ragged (masked) last block, no padding copies.
    batch_big = 601
    x_big = jax.random.normal(k_x, (batch_big, n_feats), dtype=jnp.float32)
    lut1d_big = jax.block_until_ready(
        lut1d_generator_forward(x_big, w_t, b_row, n_colors=n_colors,
                                n_vertices=n_vertices, color_share=False))
    ref_big = _reference(x_big, weight, bias, n_colors=n_colors,
                         n_vertices=n_vertices, color_share=False)
    assert lut1d_big.shape == (batch_big, n_colors, n_vertices), lut1d_big.shape
    assert jnp.allclose(lut1d_big, ref_big, atol=1e-5, rtol=1e-5)

    print("KERNEL_OK")
</pallas_src>

<mosaic_0001>
module attributes {stable_mosaic.version = 11 : i64} {
  func.func @_lut1d_kernel(%arg0: i32, %arg1: memref<2x32xf32, #tpu.memory_space<vmem>>, %arg2: memref<32x48xf32, #tpu.memory_space<vmem>>, %arg3: memref<1x48xf32, #tpu.memory_space<vmem>>, %arg4: memref<2x48xf32, #tpu.memory_space<vmem>>) attributes {dimension_semantics = [#tpu.dimension_semantics<parallel>], iteration_bounds = array<i64: 1>, scalar_prefetch = 0 : i64, scratch_operands = 0 : i64, tpu.core_type = #tpu.core_type<tc>, window_params = [{transform_indices = @transform_0, window_bounds = array<i64: 2, 32>}, {pipeline_mode = #tpu.pipeline_mode<synchronous>, transform_indices = @transform_1, window_bounds = array<i64: 32, 48>}, {pipeline_mode = #tpu.pipeline_mode<synchronous>, transform_indices = @transform_2, window_bounds = array<i64: 1, 48>}, {transform_indices = @transform_3, window_bounds = array<i64: 2, 48>}]} {
    %c0 = arith.constant 0 : index
    %c0_0 = arith.constant 0 : index
    %0 = vector.load %arg1[%c0, %c0_0] : memref<2x32xf32, #tpu.memory_space<vmem>>, vector<2x32xf32>
    %c0_1 = arith.constant 0 : index
    %c0_2 = arith.constant 0 : index
    %1 = vector.load %arg2[%c0_1, %c0_2] : memref<32x48xf32, #tpu.memory_space<vmem>>, vector<32x48xf32>
    %cst = arith.constant dense<0.000000e+00> : vector<2x48xf32>
    %2 = tpu.matmul %0, %1, %cst {dimension_numbers = #tpu.dot_dimension_numbers<[1], [0], [0], [1], [0, 0, 1, 1], [], []>} : vector<2x32xf32>, vector<32x48xf32>, vector<2x48xf32> -> vector<2x48xf32>
    %c0_3 = arith.constant 0 : index
    %c0_4 = arith.constant 0 : index
    %3 = vector.load %arg3[%c0_3, %c0_4] : memref<1x48xf32, #tpu.memory_space<vmem>>, vector<1x48xf32>
    %4 = vector.broadcast %3 : vector<1x48xf32> to vector<2x48xf32>
    %5 = arith.addf %2, %4 : vector<2x48xf32>
    %6 = arith.negf %5 : vector<2x48xf32>
    %7 = math.exp %6 : vector<2x48xf32>
    %cst_5 = arith.constant 1.000000e+00 : f32
    %8 = vector.broadcast %cst_5 : f32 to vector<2x48xf32>
    %9 = arith.addf %8, %7 : vector<2x48xf32>
    %10 = arith.divf %8, %9 : vector<2x48xf32>
    %c0_6 = arith.constant 0 : index
    %c0_7 = arith.constant 0 : index
    %11 = vector.load %arg4[%c0_6, %c0_7] : memref<2x48xf32, #tpu.memory_space<vmem>>, vector<2x48xf32>
    tpu.vector_store %arg4[%c0_6, %c0_7], %10 {strides = array<i32>} : memref<2x48xf32, #tpu.memory_space<vmem>>, vector<2x48xf32>,
    return
  }
  func.func @transform_0(%arg0: i32) -> (i32, i32) {
    %c0_i32 = arith.constant 0 : i32
    %c0_i32_0 = arith.constant 0 : i32
    return %arg0, %c0_i32 : i32, i32
  }
  func.func @transform_1(%arg0: i32) -> (i32, i32) {
    %c0_i32 = arith.constant 0 : i32
    %c0_i32_0 = arith.constant 0 : i32
    %c0_i32_1 = arith.constant 0 : i32
    return %c0_i32, %c0_i32_0 : i32, i32
  }
  func.func @transform_2(%arg0: i32) -> (i32, i32) {
    %c0_i32 = arith.constant 0 : i32
    %c0_i32_0 = arith.constant 0 : i32
    %c0_i32_1 = arith.constant 0 : i32
    return %c0_i32, %c0_i32_0 : i32, i32
  }
  func.func @transform_3(%arg0: i32) -> (i32, i32) {
    %c0_i32 = arith.constant 0 : i32
    %c0_i32_0 = arith.constant 0 : i32
    return %arg0, %c0_i32 : i32, i32
  }
}

</mosaic_0001>

<llo_original>
// kernel: lut1d_generator_forward.1
$region0: #{lut1d_generator_forward.1}
  #allocation0 [shape = 'u32[]', space=smem, size = 0x4, offset = 0x4, fixed_abs, tag = 'smem constant byte address 0x4 - core index']
  #allocation1 [shape = 'u32[144,128]{1,0:T(1,128)}', space=vmem, size = 0x12000, scoped, tag = 'internal scratch']
  %s0 = inlined_call_operand.hbm [shape: f32[2,32], index: 0, kind: input, shape index: {}]
  %s1 = inlined_call_operand.hbm [shape: f32[32,48], index: 1, kind: input, shape index: {}]
  %s2 = inlined_call_operand.vmem [shape: f32[1,48], index: 2, kind: input, shape index: {}]
  %s3 = inlined_call_operand.vmem [shape: f32[2,48], index: 3, kind: output, shape index: {}]
  %s4 = sld [smem:[#allocation0]]
  $region30: #{lut1d_generator_forward.1} parent=0
    _
  %s6 = ssub.s32 1, %s4
  %s7 = scalar_select 0, %s6, %s4
  $region1: #{lut1d_generator_forward.1} parent=0
    #allocation2 [shape = 'u8[1024]{0}', space=vmem, size = 0x400, scoped, tag = 'input window, operand 0, single buffered']
    #allocation3 [shape = 's32[1]{0}', space=sflag, size = 0x4, scoped, tag = 'scoped memory for lut1d_generator_forward.1']
    #allocation4 [shape = 'u8[16384]{0}', space=vmem, size = 0x4000, scoped, tag = 'input window, operand 1, single buffered']
    #allocation5 [shape = 's32[1]{0}', space=sflag, size = 0x4, scoped, tag = 'scoped memory for lut1d_generator_forward.1']
    %8 = vsyncpa [#allocation3], 0
    %9 = vsyncpa [#allocation5], 0
    // Predicated region
    $region2: #{lut1d_generator_forward.1} parent=1 // pred_check
      _
    $region3: #{lut1d_generator_forward.1} parent=1 // pred_check_branch
      %11 = sbr.rel (0) target = $region5
    $region4: #{lut1d_generator_forward.1} parent=1 // pred_region
      %s13 = ssub.s32 32, 32
      %14 = vsyncadd [#allocation3], %s13
      %s16 = sshll.u32 [#allocation2], 4
      %s17 = int_to_ptr.vmem [resolvable:$true] %s16
      %19 = dma.hbm_to_vmem [thread:$0]  %s0, 32, %s17, [#allocation3]
    $region5: #{lut1d_generator_forward.1} parent=1 // pred_fallthru
      _
    // Predicated region
    $region6: #{lut1d_generator_forward.1} parent=1 // pred_check
      _
    $region7: #{lut1d_generator_forward.1} parent=1 // pred_check_branch
      %21 = sbr.rel (0) target = $region9
    $region8: #{lut1d_generator_forward.1} parent=1 // pred_region
      %s23 = ssub.s32 512, 512
      %24 = vsyncadd [#allocation5], %s23
      %s25 = sshll.u32 [#allocation4], 4
      %s26 = int_to_ptr.vmem [resolvable:$true] %s25
      %31 = dma.hbm_to_vmem [thread:$0]  %s1, 512, %s26, [#allocation5], 128, 128, 8
    $region9: #{lut1d_generator_forward.1} parent=1 // pred_fallthru
      _
    // Predicated region
    $region10: #{lut1d_generator_forward.1} parent=1 // pred_check
      _
    $region11: #{lut1d_generator_forward.1} parent=1 // pred_check_branch
      %33 = sbr.rel (0) target = $region13
    $region12: #{lut1d_generator_forward.1} parent=1 // pred_region
      _
    $region13: #{lut1d_generator_forward.1} parent=1 // pred_fallthru
      _
    // Predicated region
    $region14: #{lut1d_generator_forward.1} parent=1 // pred_check
      _
    $region15: #{lut1d_generator_forward.1} parent=1 // pred_check_branch
      %35 = sbr.rel (0) target = $region17
    $region16: #{lut1d_generator_forward.1} parent=1 // pred_region
      %36 = dma.done [#allocation3], 32
    $region17: #{lut1d_generator_forward.1} parent=1 // pred_fallthru
      _
    // Predicated region
    $region18: #{lut1d_generator_forward.1} parent=1 // pred_check
      _
    $region19: #{lut1d_generator_forward.1} parent=1 // pred_check_branch
      %38 = sbr.rel (0) target = $region21
    $region20: #{lut1d_generator_forward.1} parent=1 // pred_region
      %39 = dma.done [#allocation5], 512
    $region21: #{lut1d_generator_forward.1} parent=1 // pred_fallthru
      _
    %v40 = vld [vmem:[#allocation2] sm:$0x3]
    %v41 = vld [vmem:[#allocation4] sm:$0xff]
    %v42 = vld [vmem:[#allocation4 + $0x8] sm:$0xff]
    %v43 = vld [vmem:[#allocation4 + $0x10] sm:$0xff]
    %v44 = vld [vmem:[#allocation4 + $0x18] sm:$0xff]
    %v45 = vld [vmem:[%s2] sm:$0x1]
    %v47 = vlaneseq
    %v48 = vshrl.u32 %v47, 7
    %v49 = vsub.s32 0, %v48
    %v50 = vrot.slane %v45, %v49
    %vm52 = vcmask 261120
    %v54 = vsel %vm52, %v40, 0
    %56 = vmatprep.subr.mxu0 0.0
    %57 = vmatpush1.msra.mxu0 %v41
    %58 = vmatprep.subr.mxu0 0.0
    %59 = vmatpush1.msra.mxu0 %v42
    %60 = vmatprep.subr.mxu0 0.0
    %61 = vmatpush1.msra.mxu0 %v43
    %62 = vmatprep.subr.mxu0 0.0
    %63 = vmatpush1.msra.mxu0 %v44
    %64 = vmatprep.subr.mxu0 0.0
    %65 = vmatpush1.msra.mxu0 0.0
    %66 = vmatprep.subr.mxu0 0.0
    %67 = vmatpush1.msra.mxu0 0.0
    %68 = vmatprep.subr.mxu0 0.0
    %69 = vmatpush1.msra.mxu0 0.0
    %70 = vmatprep.subr.mxu0 0.0
    %71 = vmatpush1.msra.mxu0 0.0
    %72 = vmatprep.subr.mxu0 0.0
    %73 = vmatpush1.msra.mxu0 0.0
    %74 = vmatprep.subr.mxu0 0.0
    %75 = vmatpush1.msra.mxu0 0.0
    %76 = vmatprep.subr.mxu0 0.0
    %77 = vmatpush1.msra.mxu0 0.0
    %78 = vmatprep.subr.mxu0 0.0
    %79 = vmatpush1.msra.mxu0 0.0
    %80 = vmatprep.subr.mxu0 0.0
    %81 = vmatpush1.msra.mxu0 0.0
    %82 = vmatprep.subr.mxu0 0.0
    %83 = vmatpush1.msra.mxu0 0.0
    %84 = vmatprep.subr.mxu0 0.0
    %85 = vmatpush1.msra.mxu0 0.0
    %86 = vmatprep.subr.mxu0 0.0
    %87 = vmatpush1.msra.mxu0 0.0
    %88 = vmatprep.subr.mxu0 0.0
    %89 = vmatpush1.msra.mxu0 0.0
    %90 = vmatprep.subr.mxu0 0.0
    %91 = vmatpush1.msra.mxu0 0.0
    %92 = vmatprep.subr.mxu0 0.0
    %93 = vmatpush1.msra.mxu0 0.0
    %94 = vmatprep.subr.mxu0 0.0
    %95 = vmatpush1.msra.mxu0 0.0
    %96 = vmatprep.subr.mxu0 0.0
    %97 = vmatpush1.msra.mxu0 0.0
    %98 = vmatprep.subr.mxu0 0.0
    %99 = vmatpush1.msra.mxu0 0.0
    %100 = vmatprep.subr.mxu0 0.0
    %101 = vmatpush1.msra.mxu0 0.0
    %102 = vmatprep.subr.mxu0 0.0
    %103 = vmatpush1.msra.mxu0 0.0
    %104 = vmatprep.subr.mxu0 0.0
    %105 = vmatpush1.msra.mxu0 0.0
    %106 = vmatprep.subr.mxu0 0.0
    %107 = vmatpush1.msra.mxu0 0.0
    %108 = vmatprep.subr.mxu0 0.0
    %109 = vmatpush1.msra.mxu0 0.0
    %110 = vmatprep.subr.mxu0 0.0
    %111 = vmatpush1.msra.mxu0 0.0
    %112 = vmatprep.subr.mxu0 0.0
    %113 = vmatpush1.msra.mxu0 0.0
    %114 = vmatprep.subr.mxu0 0.0
    %115 = vmatpush1.msra.mxu0 0.0
    %116 = vmatprep.subr.mxu0 0.0
    %117 = vmatpush1.msra.mxu0 0.0
    %118 = vmatprep.subr.mxu0 0.0
    %119 = vmatpush1.msra.mxu0 0.0
    %120 = vmatprep.mubr.f32.mxu0 0.0
    %121 = vmatmul.mubr.f32.gmra.mrb[0].mxu0 %v54
    %v122 = vpop.f32.mrb[0].mxu0
    %v123 = vadd.f32 %v50, %v122
    %v124 = vpop.f32.mrb[0].mxu0
    %125 = vdwg.mxu0
    %v126 = vxor.u32 %v123, 2147483648
    %v127 = vmul.f32 %v126, 1.442695
    %v128 = vpow.pop %v127
    %v129 = vadd.f32 %v128, 1.0
    %v130 = vrcp.pop %v129
    %v131 = vmul.f32 1.0, %v130
    %vm132 = vcmask 386048
    %133 = vst.msk [vmem:[%s3] sm:$0x3] %vm132, %v131
    // Predicated region
    $region22: #{lut1d_generator_forward.1} parent=1 // pred_check
      _
    $region23: #{lut1d_generator_forward.1} parent=1 // pred_check_branch
      %135 = sbr.rel (0) target = $region25
    $region24: #{lut1d_generator_forward.1} parent=1 // pred_region
      _
    $region25: #{lut1d_generator_forward.1} parent=1 // pred_fallthru
      _
    // Predicated region
    $region26: #{lut1d_generator_forward.1} parent=1 // pred_check
      _
    $region27: #{lut1d_generator_forward.1} parent=1 // pred_check_branch
      %137 = sbr.rel (0) target = $region29
    $region28: #{lut1d_generator_forward.1} parent=1 // pred_region
      _
    $region29: #{lut1d_generator_forward.1} parent=1 // pred_fallthru
      _
    %138 = vsyncpa [#allocation3], 1
    %139 = vsyncpa [#allocation5], 1

</llo_original>
